<compile_context>
chip_gen: v7x
topology: tpu7x:2x2x1
jax: 0.10.0
libtpu: 0.0.40
codegen_flags: <defaults>
</compile_context>

<pallas_src>
import functools
import math

import jax
import jax.numpy as jnp
from jax.experimental import pallas as pl
from jax.experimental.pallas import tpu as pltpu

_NEG_LOG_1E4 = -math.log(1e-4)  # -log(clip(one_hot, 1e-4, 1)) off the target class


def _robust_loss_kernel(logits_ref, tgt_ref, out_ref, *, n_rows, epsilon, alpha, beta):
    # logits_ref: (TB, C) native dtype, tgt_ref: (TB, 1) int32,
    # out_ref: (1, 1, 1) f32 per-tile weighted partial sum.
    x = logits_ref[...].astype(jnp.float32)                      # (TB, C), upcast in-register
    tgt = tgt_ref[...]                                           # (TB, 1) int32
    tb, c = x.shape

    # Ragged-tile handling is specialized at trace time (tb, n_rows are Python ints).
    ragged = (n_rows % tb) != 0
    if ragged:
        i = pl.program_id(0)
        row = jax.lax.broadcasted_iota(jnp.int32, (tb, 1), 0)    # (TB, 1)
        valid = (i * tb + row) < n_rows                          # (TB, 1) bool
        x = jnp.where(valid, x, 0.0)                             # padded rows -> benign zeros

    # Target-class membership: (1, C) iota broadcast against (TB, 1) targets.
    col = jax.lax.broadcasted_iota(jnp.int32, (1, c), 1)         # (1, C)
    hit = col == tgt                                             # (TB, C) bool

    # Stable softmax building blocks; no full-tile log_probs is materialized.
    m = jnp.max(x, axis=1, keepdims=True)                        # (TB, 1)
    ez = jnp.exp(x - m)                                          # (TB, C)
    denom = jnp.sum(ez, axis=1, keepdims=True)                   # (TB, 1)
    lse = m + jnp.log(denom)                                     # (TB, 1) log-sum-exp

    sum_x = jnp.sum(x, axis=1, keepdims=True)                    # (TB, 1)
    x_t = jnp.sum(jnp.where(hit, x, 0.0), axis=1, keepdims=True)  # logit at target class

    # NCE rows: -log_softmax[t] / (-sum(log_softmax) + eps)
    #         = (lse - x_t) / (C*lse - sum_x + eps)
    nce_rows = (lse - x_t) / (float(c) * lse - sum_x + epsilon)  # (TB, 1)

    # RCE rows: -sum(clip(softmax,1e-7,1) * log(clip(one_hot,1e-4,1)))
    #         = -log(1e-4) * (sum(pred) - pred[t]),  pred clipped before the subtraction.
    pred = jnp.clip(ez * (1.0 / denom), 1e-7, 1.0)               # (TB, C); per-row reciprocal
    sum_pred = jnp.sum(pred, axis=1, keepdims=True)              # (TB, 1)
    pred_t = jnp.sum(jnp.where(hit, pred, 0.0), axis=1, keepdims=True)
    rce_rows = _NEG_LOG_1E4 * (sum_pred - pred_t)                # (TB, 1)

    if ragged:
        validf = valid.astype(jnp.float32)
        nce_rows = nce_rows * validf
        rce_rows = rce_rows * validf

    nce_part = jnp.sum(nce_rows, axis=0, keepdims=True)          # (1, 1)
    rce_part = jnp.sum(rce_rows, axis=0, keepdims=True)          # (1, 1)
    out_ref[...] = (alpha * nce_part + beta * rce_part).reshape(1, 1, 1)


def _pick_tile_rows(b, c, elt_bytes):
    """Rows per batch tile: ~1-1.5 MiB of streamed logits per buffer, with VMEM
    headroom for the handful of (TB, C_pad) f32 temporaries, biased to divide B."""
    sub = {1: 32, 2: 16}.get(elt_bytes, 8)            # sublane quantum per input dtype
    if b <= sub:
        return int(b)                                 # full-extent block (exempt from (8,128))
    c_pad = max(((c + 127) // 128) * 128, 128)        # lane padding of the logits tile
    # Per-row VMEM: 2x double-buffered native-dtype logits + ~4 f32 full-width
    # temporaries (ez / pred / masks) + a few lane-padded (TB, 1) vectors.
    per_row = 2 * c_pad * elt_bytes + 4 * c_pad * 4 + 4 * 128 * 4
    budget = 10 * 1024 * 1024                         # total working set << 32 MiB scoped VMEM
    tb = budget // per_row
    # Cap streamed logits at ~1.5 MiB per buffer (pipelining saturates near 1 MiB).
    tb = min(tb, (3 * 1024 * 1024 // 2) // (c_pad * elt_bytes))
    tb = max(sub, min(tb, b))
    if tb >= b:
        return int(b)
    tb = max(sub, (tb // sub) * sub)
    # Prefer a tile that divides B exactly (drops the ragged-row mask), but never
    # shrink by more than 2x to get it.
    cand = tb
    while cand >= max(sub, tb // 2):
        if b % cand == 0:
            return int(cand)
        cand -= sub
    return int(tb)


def robust_loss(outputs, targets, *, alpha=0.1, beta=0.1, epsilon=1e-6, tile_rows=None):
    """outputs: (B, C) float (any float dtype), targets: (B,) int -> scalar f32 loss."""
    B, C = outputs.shape
    targets2d = targets.astype(jnp.int32).reshape(B, 1)          # (B, 1), tiny
    elt = jnp.dtype(outputs.dtype).itemsize

    if tile_rows is None:
        tb = _pick_tile_rows(B, C, elt)
    else:
        sub = {1: 32, 2: 16}.get(elt, 8)
        tb = min(int(tile_rows), B)
        if tb < B:
            tb = max(sub, (tb // sub) * sub)

    grid_b = int(pl.cdiv(B, tb))
    kernel = functools.partial(
        _robust_loss_kernel,
        n_rows=B,
        epsilon=float(epsilon),
        alpha=float(alpha),
        beta=float(beta),
    )

    parts = pl.pallas_call(
        kernel,
        grid=(grid_b,),
        out_shape=jax.ShapeDtypeStruct((grid_b, 1, 1), jnp.float32),
        in_specs=[
            pl.BlockSpec((tb, C), lambda i: (i, 0)),
            pl.BlockSpec((tb, 1), lambda i: (i, 0)),
        ],
        out_specs=pl.BlockSpec((1, 1, 1), lambda i: (i, 0, 0)),
        compiler_params=pltpu.CompilerParams(
            dimension_semantics=("parallel",),        # independent tiles: megacore-OK on v7x
            vmem_limit_bytes=32 * 1024 * 1024,        # explicit (v5e default is only 16 MiB)
        ),
    )(outputs, targets2d)

    return jnp.sum(parts) * (1.0 / B)                 # batch mean applied exactly once


def robust_loss_ref(outputs, targets, *, alpha=0.1, beta=0.1, epsilon=1e-6):
    """Plain-JAX reference mirroring the PyTorch forward exactly."""
    C = outputs.shape[1]
    log_probs = jax.nn.log_softmax(outputs.astype(jnp.float32), axis=1)
    one_hot = jax.nn.one_hot(targets, C, dtype=jnp.float32)
    nce = -jnp.sum(log_probs * one_hot, axis=1) / (-jnp.sum(log_probs, axis=1) + epsilon)
    nce = jnp.mean(nce)
    pred = jax.nn.softmax(outputs.astype(jnp.float32), axis=1)
    pred = jnp.clip(pred, 1e-7, 1.0)
    label_one_hot = jnp.clip(one_hot, 1e-4, 1.0)
    rce = jnp.mean(-jnp.sum(pred * jnp.log(label_one_hot), axis=1))
    return alpha * nce + beta * rce


if __name__ == "__main__":
    key = jax.random.PRNGKey(0)
    k1, k2, k3, k4, k5, k6 = jax.random.split(key, 6)

    # Case 1: module defaults (num_classes=10), single full-extent tile, f32.
    B, C = 8, 10
    outputs = jax.random.normal(k1, (B, C), dtype=jnp.float32) * 3.0
    targets = jax.random.randint(k2, (B,), 0, C, dtype=jnp.int32)
    loss = jax.block_until_ready(robust_loss(outputs, targets))
    ref = jax.block_until_ready(robust_loss_ref(outputs, targets))
    assert jnp.allclose(loss, ref, rtol=1e-5, atol=1e-5), (loss, ref)

    # Case 2: multi-tile grid with a ragged last tile (20 rows, tile_rows=8 -> 3 tiles,
    # in-kernel validity mask emitted).
    B2, C2 = 20, 16
    outputs2 = jax.random.normal(k3, (B2, C2), dtype=jnp.float32) * 2.0
    targets2 = jax.random.randint(k4, (B2,), 0, C2, dtype=jnp.int32)
    loss2 = jax.block_until_ready(robust_loss(outputs2, targets2, tile_rows=8))
    ref2 = jax.block_until_ready(robust_loss_ref(outputs2, targets2))
    assert jnp.allclose(loss2, ref2, rtol=1e-5, atol=1e-5), (loss2, ref2)

    # Case 3: bf16 logits streamed natively, lane-full C=128, multi-tile with B % TB == 0
    # (ragged mask specialized away at trace time).
    B3, C3 = 48, 128
    outputs3 = (jax.random.normal(k5, (B3, C3), dtype=jnp.float32) * 2.0).astype(jnp.bfloat16)
    targets3 = jax.random.randint(k6, (B3,), 0, C3, dtype=jnp.int32)
    loss3 = jax.block_until_ready(robust_loss(outputs3, targets3, tile_rows=16))
    ref3 = jax.block_until_ready(robust_loss_ref(outputs3.astype(jnp.float32), targets3))
    assert jnp.allclose(loss3, ref3, rtol=2e-2, atol=2e-2), (loss3, ref3)

    print("KERNEL_OK")
</pallas_src>

<mosaic_0001>
module attributes {stable_mosaic.version = 11 : i64} {
  func.func @_robust_loss_kernel(%arg0: i32, %arg1: memref<8x10xf32, #tpu.memory_space<vmem>>, %arg2: memref<8x1xi32, #tpu.memory_space<vmem>>, %arg3: memref<1x1x1xf32, #tpu.memory_space<vmem>>) attributes {dimension_semantics = [#tpu.dimension_semantics<parallel>], iteration_bounds = array<i64: 1>, scalar_prefetch = 0 : i64, scratch_operands = 0 : i64, tpu.core_type = #tpu.core_type<tc>, window_params = [{transform_indices = @transform_0, window_bounds = array<i64: 8, 10>}, {transform_indices = @transform_1, window_bounds = array<i64: 8, 1>}, {transform_indices = @transform_2, window_bounds = array<i64: 1, 1, 1>}]} {
    %c0 = arith.constant 0 : index
    %c0_0 = arith.constant 0 : index
    %0 = vector.load %arg1[%c0, %c0_0] : memref<8x10xf32, #tpu.memory_space<vmem>>, vector<8x10xf32>
    %c0_1 = arith.constant 0 : index
    %c0_2 = arith.constant 0 : index
    %1 = vector.load %arg2[%c0_1, %c0_2] : memref<8x1xi32, #tpu.memory_space<vmem>>, vector<8x1xi32>
    %2 = tpu.iota {dimensions = array<i32: 1>} : vector<1x10xi32>
    %3 = vector.broadcast %2 : vector<1x10xi32> to vector<8x10xi32>
    %4 = vector.broadcast %1 : vector<8x1xi32> to vector<8x10xi32>
    %5 = arith.cmpi eq, %3, %4 : vector<8x10xi32>
    %cst = arith.constant dense<0xFF800000> : vector<8xf32>
    %6 = vector.multi_reduction <maximumf>, %0, %cst [1] : vector<8x10xf32> to vector<8xf32>
    %7 = vector.shape_cast %6 : vector<8xf32> to vector<8x1xf32>
    %8 = vector.broadcast %7 : vector<8x1xf32> to vector<8x10xf32>
    %9 = arith.subf %0, %8 : vector<8x10xf32>
    %10 = math.exp %9 : vector<8x10xf32>
    %cst_3 = arith.constant dense<0.000000e+00> : vector<8xf32>
    %11 = vector.multi_reduction <add>, %10, %cst_3 [1] : vector<8x10xf32> to vector<8xf32>
    %12 = vector.shape_cast %11 : vector<8xf32> to vector<8x1xf32>
    %13 = math.log %12 : vector<8x1xf32>
    %14 = arith.addf %7, %13 : vector<8x1xf32>
    %cst_4 = arith.constant dense<0.000000e+00> : vector<8xf32>
    %15 = vector.multi_reduction <add>, %0, %cst_4 [1] : vector<8x10xf32> to vector<8xf32>
    %16 = vector.shape_cast %15 : vector<8xf32> to vector<8x1xf32>
    %cst_5 = arith.constant 0.000000e+00 : f32
    %17 = vector.broadcast %cst_5 : f32 to vector<8x10xf32>
    %18 = arith.select %5, %0, %17 : vector<8x10xi1>, vector<8x10xf32>
    %cst_6 = arith.constant dense<0.000000e+00> : vector<8xf32>
    %19 = vector.multi_reduction <add>, %18, %cst_6 [1] : vector<8x10xf32> to vector<8xf32>
    %20 = vector.shape_cast %19 : vector<8xf32> to vector<8x1xf32>
    %21 = arith.subf %14, %20 : vector<8x1xf32>
    %cst_7 = arith.constant 1.000000e+01 : f32
    %22 = vector.broadcast %cst_7 : f32 to vector<8x1xf32>
    %23 = arith.mulf %22, %14 : vector<8x1xf32>
    %24 = arith.subf %23, %16 : vector<8x1xf32>
    %cst_8 = arith.constant 9.99999997E-7 : f32
    %25 = vector.broadcast %cst_8 : f32 to vector<8x1xf32>
    %26 = arith.addf %24, %25 : vector<8x1xf32>
    %27 = arith.divf %21, %26 : vector<8x1xf32>
    %cst_9 = arith.constant 1.000000e+00 : f32
    %28 = vector.broadcast %cst_9 : f32 to vector<8x1xf32>
    %29 = arith.divf %28, %12 : vector<8x1xf32>
    %30 = vector.broadcast %29 : vector<8x1xf32> to vector<8x10xf32>
    %31 = arith.mulf %10, %30 : vector<8x10xf32>
    %cst_10 = arith.constant 1.000000e-07 : f32
    %cst_11 = arith.constant 1.000000e+00 : f32
    %32 = vector.broadcast %cst_10 : f32 to vector<8x10xf32>
    %33 = arith.maximumf %32, %31 : vector<8x10xf32>
    %34 = vector.broadcast %cst_11 : f32 to vector<8x10xf32>
    %35 = arith.minimumf %34, %33 : vector<8x10xf32>
    %cst_12 = arith.constant dense<0.000000e+00> : vector<8xf32>
    %36 = vector.multi_reduction <add>, %35, %cst_12 [1] : vector<8x10xf32> to vector<8xf32>
    %37 = vector.shape_cast %36 : vector<8xf32> to vector<8x1xf32>
    %cst_13 = arith.constant 0.000000e+00 : f32
    %38 = vector.broadcast %cst_13 : f32 to vector<8x10xf32>
    %39 = arith.select %5, %35, %38 : vector<8x10xi1>, vector<8x10xf32>
    %cst_14 = arith.constant dense<0.000000e+00> : vector<8xf32>
    %40 = vector.multi_reduction <add>, %39, %cst_14 [1] : vector<8x10xf32> to vector<8xf32>
    %41 = vector.shape_cast %40 : vector<8xf32> to vector<8x1xf32>
    %42 = arith.subf %37, %41 : vector<8x1xf32>
    %cst_15 = arith.constant 9.21034049 : f32
    %43 = vector.broadcast %cst_15 : f32 to vector<8x1xf32>
    %44 = arith.mulf %43, %42 : vector<8x1xf32>
    %cst_16 = arith.constant dense<0.000000e+00> : vector<1xf32>
    %45 = vector.multi_reduction <add>, %27, %cst_16 [0] : vector<8x1xf32> to vector<1xf32>
    %46 = vector.shape_cast %45 : vector<1xf32> to vector<1x1xf32>
    %cst_17 = arith.constant dense<0.000000e+00> : vector<1xf32>
    %47 = vector.multi_reduction <add>, %44, %cst_17 [0] : vector<8x1xf32> to vector<1xf32>
    %48 = vector.shape_cast %47 : vector<1xf32> to vector<1x1xf32>
    %cst_18 = arith.constant 1.000000e-01 : f32
    %49 = vector.broadcast %cst_18 : f32 to vector<1x1xf32>
    %50 = arith.mulf %49, %46 : vector<1x1xf32>
    %cst_19 = arith.constant 1.000000e-01 : f32
    %51 = vector.broadcast %cst_19 : f32 to vector<1x1xf32>
    %52 = arith.mulf %51, %48 : vector<1x1xf32>
    %53 = arith.addf %50, %52 : vector<1x1xf32>
    %54 = vector.shape_cast %53 : vector<1x1xf32> to vector<1x1x1xf32>
    %c0_20 = arith.constant 0 : index
    %c0_21 = arith.constant 0 : index
    %c0_22 = arith.constant 0 : index
    %55 = vector.load %arg3[%c0_20, %c0_21, %c0_22] : memref<1x1x1xf32, #tpu.memory_space<vmem>>, vector<1x1x1xf32>
    tpu.vector_store %arg3[%c0_20, %c0_21, %c0_22], %54 {strides = array<i32>} : memref<1x1x1xf32, #tpu.memory_space<vmem>>, vector<1x1x1xf32>,
    return
  }
  func.func @transform_0(%arg0: i32) -> (i32, i32) {
    %c0_i32 = arith.constant 0 : i32
    %c0_i32_0 = arith.constant 0 : i32
    return %arg0, %c0_i32 : i32, i32
  }
  func.func @transform_1(%arg0: i32) -> (i32, i32) {
    %c0_i32 = arith.constant 0 : i32
    %c0_i32_0 = arith.constant 0 : i32
    return %arg0, %c0_i32 : i32, i32
  }
  func.func @transform_2(%arg0: i32) -> (i32, i32, i32) {
    %c0_i32 = arith.constant 0 : i32
    %c0_i32_0 = arith.constant 0 : i32
    %c0_i32_1 = arith.constant 0 : i32
    return %arg0, %c0_i32, %c0_i32_0 : i32, i32, i32
  }
}

</mosaic_0001>

<llo_original>
// kernel: tpu_custom_call.1
$region0: #{tpu_custom_call.1}
  #allocation0 [shape = 'u32[]', space=smem, size = 0x4, offset = 0x4, fixed_abs, tag = 'smem constant byte address 0x4 - core index']
  #allocation1 [shape = 'u32[144,128]{1,0:T(1,128)}', space=vmem, size = 0x12000, scoped, tag = 'internal scratch']
  %s0 = inlined_call_operand.vmem [shape: f32[8,10], index: 0, kind: input, shape index: {}]
  %s1 = inlined_call_operand.vmem [shape: s32[8,1], index: 1, kind: input, shape index: {}]
  %s2 = inlined_call_operand.hbm [shape: f32[1,1,1], index: 2, kind: output, shape index: {}]
  %s3 = sld [smem:[#allocation0]]
  $region18: #{tpu_custom_call.1} parent=0
    _
  %s5 = ssub.s32 1, %s3
  %s6 = scalar_select 0, %s5, %s3
  $region1: #{tpu_custom_call.1} parent=0
    #allocation2 [shape = 'u8[512]{0}', space=vmem, size = 0x400, scoped, tag = 'output window, operand 0, single buffered']
    #allocation3 [shape = 's32[1]{0}', space=sflag, size = 0x4, scoped, tag = 'scoped memory for tpu_custom_call.1']
    %7 = vsyncpa [#allocation3], 0
    // Predicated region
    $region2: #{tpu_custom_call.1} parent=1 // pred_check
      _
    $region3: #{tpu_custom_call.1} parent=1 // pred_check_branch
      %9 = sbr.rel (0) target = $region5
    $region4: #{tpu_custom_call.1} parent=1 // pred_region
      _
    $region5: #{tpu_custom_call.1} parent=1 // pred_fallthru
      _
    // Predicated region
    $region6: #{tpu_custom_call.1} parent=1 // pred_check
      _
    $region7: #{tpu_custom_call.1} parent=1 // pred_check_branch
      %11 = sbr.rel (0) target = $region9
    $region8: #{tpu_custom_call.1} parent=1 // pred_region
      _
    $region9: #{tpu_custom_call.1} parent=1 // pred_fallthru
      _
    %v12 = vld [vmem:[%s0] sm:$0xff]
    %v13 = vld [vmem:[%s1] sm:$0xff]
    %v14 = vlaneseq
    %v15 = vand.u32 %v14, 127
    %16 = vset.pattern.permute.xlu0 0
    %17 = vperm.xlu0 %16, %v13
    %v18 = vpop.permute.xlu0 %17
    %vm19 = vcmp.eq.s32.totalorder %v15, %v18
    %vm20 = vcmask 80896
    %v21 = vsel %vm20, %v12, -inf
    %22 = vmax.xlane.f32.xlu0 %v21
    %v23 = vpop.xlane.xlu0 %22
    %v24 = vsub.f32 %v12, %v23
    %v25 = vmul.f32 %v24, 1.442695
    %v26 = vpow.pop %v25
    %v27 = vsel %vm20, %v26, 0.0
    %28 = vadd.xlane.f32.xlu0 %v27
    %v29 = vpop.xlane.xlu0 %28
    %v30 = vlog2.pop %v29
    %v31 = vmul.f32 %v30, 0.6931472
    %v32 = vadd.f32 %v23, %v31
    %v33 = vsel %vm20, %v12, 0.0
    %34 = vadd.xlane.f32.xlu0 %v33
    %v35 = vpop.xlane.xlu0 %34
    %v36 = vsel %vm19, %v12, 0.0
    %v37 = vsel %vm20, %v36, 0.0
    %38 = vadd.xlane.f32.xlu0 %v37
    %v39 = vpop.xlane.xlu0 %38
    %v40 = vsub.f32 %v32, %v39
    %v41 = vmul.f32 %v32, 10.0
    %v42 = vsub.f32 %v41, %v35
    %v43 = vadd.f32 %v42, 1e-06
    %v44 = vrcp.pop %v43
    %v45 = vmul.f32 %v40, %v44
    %v46 = vrcp.pop %v29
    %v47 = vmul.f32 1.0, %v46
    %v48 = vmul.f32 %v26, %v47
    %v49 = vmax.f32 %v48, 1e-07
    %v50 = vmin.f32 %v49, 1.0
    %v51 = vsel %vm20, %v50, 0.0
    %52 = vadd.xlane.f32.xlu0 %v51
    %v53 = vpop.xlane.xlu0 %52
    %v54 = vsel %vm19, %v50, 0.0
    %v55 = vsel %vm20, %v54, 0.0
    %56 = vadd.xlane.f32.xlu0 %v55
    %v57 = vpop.xlane.xlu0 %56
    %v58 = vsub.f32 %v53, %v57
    %v59 = vmul.f32 %v58, 9.2103405
    %v60 = vrot.slane %v45, 4
    %v61 = vadd.f32 %v45, %v60
    %v62 = vrot.slane %v61, 2
    %v63 = vadd.f32 %v61, %v62
    %v64 = vrot.slane %v63, 1
    %v65 = vadd.f32 %v63, %v64
    %v66 = vrot.slane %v59, 4
    %v67 = vadd.f32 %v59, %v66
    %v68 = vrot.slane %v67, 2
    %v69 = vadd.f32 %v67, %v68
    %v70 = vrot.slane %v69, 1
    %v71 = vadd.f32 %v69, %v70
    %v72 = vmul.f32 %v65, 0.1
    %v73 = vmul.f32 %v71, 0.1
    %v74 = vadd.f32 %v72, %v73
    %vm75 = vcmask 0
    %76 = vst.msk [vmem:[#allocation2] sm:$0x1] %vm75, %v74
    // Predicated region
    $region10: #{tpu_custom_call.1} parent=1 // pred_check
      _
    $region11: #{tpu_custom_call.1} parent=1 // pred_check_branch
      %78 = sbr.rel (0) target = $region13
    $region12: #{tpu_custom_call.1} parent=1 // pred_region
      %s80 = ssub.s32 16, 16
      %81 = vsyncadd [#allocation3], %s80
      %s83 = sshll.u32 [#allocation2], 4
      %s84 = int_to_ptr.vmem [resolvable:$true] %s83
      %86 = dma.vmem_to_hbm [thread:$0]  %s84, 16, %s2, [#allocation3]
    $region13: #{tpu_custom_call.1} parent=1 // pred_fallthru
      _
    // Predicated region
    $region14: #{tpu_custom_call.1} parent=1 // pred_check
      _
    $region15: #{tpu_custom_call.1} parent=1 // pred_check_branch
      %88 = sbr.rel (0) target = $region17
    $region16: #{tpu_custom_call.1} parent=1 // pred_region
      %89 = dma.done [#allocation3], 16
    $region17: #{tpu_custom_call.1} parent=1 // pred_fallthru
      _
    %90 = vsyncpa [#allocation3], 1

</llo_original>
